<compile_context>
chip_gen: v7x
topology: tpu7x:2x2x1
jax: 0.10.0
libtpu: 0.0.40
codegen_flags: <defaults>
</compile_context>

<pallas_src>
import jax
import jax.numpy as jnp
from jax.experimental import pallas as pl
from jax.experimental.pallas import tpu as pltpu


# ----------------------------------------------------------------------------- kernels

def trend_block_kernel_rows(
    x_ref,        # (TB, L)       bf16
    w1_ref,       # (L, U)        bf16
    wh_ref,       # (3, U, U)     bf16   (fc2, fc3, fc4 stacked)
    b_ref,        # (4, U)        f32    (fc1..fc4 biases stacked)
    wout_ref,     # (U, L+F)      bf16   (theta_fc pre-composed with trend bases)
    out_ref,      # (TB, L+F)     f32    (backcast || forecast)
):
    """Row-major path for small batches (batch on sublanes)."""
    b = b_ref[...]
    h = jnp.maximum(
        jnp.dot(x_ref[...], w1_ref[...], preferred_element_type=jnp.float32)
        + b[0:1, :],
        0.0,
    )
    for layer in range(3):
        h = jnp.maximum(
            jnp.dot(h.astype(wh_ref.dtype), wh_ref[layer],
                    preferred_element_type=jnp.float32)
            + b[layer + 1:layer + 2, :],
            0.0,
        )
    out_ref[...] = jnp.dot(
        h.astype(wout_ref.dtype), wout_ref[...], preferred_element_type=jnp.float32
    ).astype(out_ref.dtype)


def trend_block_kernel_lanes(
    xT_ref,       # (L, TB)       bf16   x transposed: batch on lanes
    w1T_ref,      # (U, L)        bf16
    whT_ref,      # (3, U, U)     bf16   (fc2^T, fc3^T, fc4^T stacked)
    bT_ref,       # (U, 4)        f32
    wbT_ref,      # (L, U)        bf16   (T_b^T @ wt^T)
    wfT_ref,      # (F, U)        bf16   (T_f^T @ wt^T)
    back_ref,     # (L, TB)       f32    backcast^T
    fore_ref,     # (F, TB)       f32    forecast^T
):
    """Batch-on-lanes path: lane-dense intermediates and stores for TB % 128 == 0."""
    bT = bT_ref[...]  # (U, 4) f32
    # fc1 + ReLU: h is (U, TB) — all 128 lanes used per vreg.
    h = jnp.maximum(
        jnp.dot(w1T_ref[...], xT_ref[...], preferred_element_type=jnp.float32)
        + bT[:, 0:1],
        0.0,
    )
    # fc2..fc4 + ReLU (statically unrolled)
    for layer in range(3):
        h = jnp.maximum(
            jnp.dot(whT_ref[layer], h.astype(whT_ref.dtype),
                    preferred_element_type=jnp.float32)
            + bT[:, layer + 1:layer + 2],
            0.0,
        )
    # Pre-composed (theta_fc ∘ trend basis) projections; backcast/forecast split is
    # done here (two lane-dense stores) instead of slicing the fused output in HBM.
    hb = h.astype(wbT_ref.dtype)
    back_ref[...] = jnp.dot(
        wbT_ref[...], hb, preferred_element_type=jnp.float32).astype(back_ref.dtype)
    fore_ref[...] = jnp.dot(
        wfT_ref[...], hb, preferred_element_type=jnp.float32).astype(fore_ref.dtype)


# ----------------------------------------------------------------------------- wrapper

def _const_spec(shape):
    """BlockSpec for a grid-invariant operand: constant block index, single buffer."""
    nd = len(shape)
    return pl.BlockSpec(shape, lambda i, _nd=nd: (0,) * _nd,
                        pipeline_mode=pl.Buffered(1))


def _pick_batch_tile(batch):
    if batch <= 128:
        return batch  # single grid step; tiny batch is latency-bound anyway
    # >= 2 grid steps so both v7x TensorCores get work; tiles up to 2048 rows to
    # amortize the ~0.35 us/step overhead (per-step working set is < 1 MiB).
    tile = min(2048, -(-batch // 2))
    tile = max(128, (tile // 128) * 128)  # lane-dense stores in the lanes layout
    return tile


def trend_block_forward(x, packed, *, batch_tile=None, transposed_outputs=False):
    """x: (B, L) or (B, L, 1). Returns (backcast (B, L), forecast (B, F)) in f32.

    With transposed_outputs=True the batch-major transposes are skipped and the
    results come back as (L, B) / (F, B) for consumers that can fuse the layout.
    """
    # squeeze_last_dim
    if x.ndim == 3 and x.shape[-1] == 1:
        x = x[..., 0]

    L, F, U = packed["dims"]
    B = x.shape[0]
    assert x.shape[1] == L

    if batch_tile is None:
        batch_tile = _pick_batch_tile(B)
    num_tiles = -(-B // batch_tile)
    B_pad = num_tiles * batch_tile
    if B_pad != B:
        x = jnp.pad(x, ((0, B_pad - B), (0, 0)))  # padded rows sliced off below
    grid = (num_tiles,)

    cparams = pltpu.CompilerParams(dimension_semantics=("parallel",))

    if batch_tile >= 128:
        # ---- batch-on-lanes path -------------------------------------------------
        w1T, whT, bT, wbT, wfT = packed["lanes"]
        xT = x.T.astype(w1T.dtype)  # (L, B_pad); layout plumbing done host-side

        backT, foreT = pl.pallas_call(
            trend_block_kernel_lanes,
            out_shape=(jax.ShapeDtypeStruct((L, B_pad), jnp.float32),
                       jax.ShapeDtypeStruct((F, B_pad), jnp.float32)),
            grid_spec=pltpu.PrefetchScalarGridSpec(
                num_scalar_prefetch=0,
                grid=grid,
                in_specs=[
                    pl.BlockSpec((L, batch_tile), lambda i: (0, i)),
                    _const_spec(w1T.shape),
                    _const_spec(whT.shape),
                    _const_spec(bT.shape),
                    _const_spec(wbT.shape),
                    _const_spec(wfT.shape),
                ],
                out_specs=[
                    pl.BlockSpec((L, batch_tile), lambda i: (0, i)),
                    pl.BlockSpec((F, batch_tile), lambda i: (0, i)),
                ],
            ),
            compiler_params=cparams,
        )(xT, w1T, whT, bT, wbT, wfT)

        if transposed_outputs:
            return backT[:, :B], foreT[:, :B]
        return backT[:, :B].T, foreT[:, :B].T

    # ---- small-batch row-major path ----------------------------------------------
    w1, wh, b_all, w_out = packed["rows"]
    x_c = x.astype(w1.dtype)
    LF = L + F

    out = pl.pallas_call(
        trend_block_kernel_rows,
        out_shape=jax.ShapeDtypeStruct((B_pad, LF), jnp.float32),
        grid_spec=pltpu.PrefetchScalarGridSpec(
            num_scalar_prefetch=0,
            grid=grid,
            in_specs=[
                pl.BlockSpec((batch_tile, L), lambda i: (i, 0)),
                _const_spec(w1.shape),
                _const_spec(wh.shape),
                _const_spec(b_all.shape),
                _const_spec(w_out.shape),
            ],
            out_specs=pl.BlockSpec((batch_tile, LF), lambda i: (i, 0)),
        ),
        compiler_params=cparams,
    )(x_c, w1, wh, b_all, w_out)

    if transposed_outputs:
        return out[:B, :L].T, out[:B, L:].T
    return out[:B, :L], out[:B, L:]


# ----------------------------------------------------------------------------- params

def init_trend_block_params(key, units, thetas_dim, backcast_length, forecast_length):
    """Torch-like init: uniform(-1/sqrt(fan_in), 1/sqrt(fan_in)). Returns raw f32 params."""
    assert thetas_dim <= 4, "thetas_dim is too big."
    ks = jax.random.split(key, 9)

    def lin(kw, kb, fan_in, fan_out, bias=True):
        bound = 1.0 / (fan_in ** 0.5)
        w = jax.random.uniform(kw, (fan_in, fan_out), jnp.float32, -bound, bound)
        if bias:
            b = jax.random.uniform(kb, (1, fan_out), jnp.float32, -bound, bound)
            return w, b
        return w

    w1, b1 = lin(ks[0], ks[1], backcast_length, units)
    w2, b2 = lin(ks[2], ks[3], units, units)
    w3, b3 = lin(ks[4], ks[5], units, units)
    w4, b4 = lin(ks[6], ks[7], units, units)
    wt = lin(ks[8], None, units, thetas_dim, bias=False)  # shared theta_b_fc == theta_f_fc
    return (w1, b1, w2, b2, w3, b3, w4, b4, wt)


def trend_bases(thetas_dim, backcast_length, forecast_length):
    """T[i, :] = t**i with t = arange(horizon)/horizon (matches linear_space/trend_model)."""
    t_b = jnp.arange(backcast_length, dtype=jnp.float32) / backcast_length
    t_f = jnp.arange(forecast_length, dtype=jnp.float32) / forecast_length
    powers = jnp.arange(thetas_dim, dtype=jnp.float32)[:, None]
    return t_b[None, :] ** powers, t_f[None, :] ** powers   # (P, L), (P, F)


def pack_params(raw_params, backcast_length, forecast_length, *, matmul_dtype=jnp.bfloat16):
    """Host-side pre-composition + packing for both kernel layouts."""
    (w1, b1, w2, b2, w3, b3, w4, b4, wt) = raw_params
    thetas_dim = wt.shape[1]
    units = w1.shape[1]

    t_back, t_fore = trend_bases(thetas_dim, backcast_length, forecast_length)
    w_back = wt @ t_back                                   # (U, L), composed in f32
    w_fore = wt @ t_fore                                   # (U, F)
    w_out = jnp.concatenate([w_back, w_fore], axis=1)      # (U, L+F)
    b_all = jnp.concatenate([b1, b2, b3, b4], axis=0)      # (4, U), stays f32

    rows = (
        w1.astype(matmul_dtype),                                   # (L, U)
        jnp.stack([w2, w3, w4], axis=0).astype(matmul_dtype),      # (3, U, U)
        b_all,                                                     # (4, U)
        w_out.astype(matmul_dtype),                                # (U, L+F)
    )
    lanes = (
        w1.T.astype(matmul_dtype),                                 # (U, L)
        jnp.stack([w2.T, w3.T, w4.T], axis=0).astype(matmul_dtype),# (3, U, U)
        b_all.T,                                                   # (U, 4)
        w_back.T.astype(matmul_dtype),                             # (L, U)
        w_fore.T.astype(matmul_dtype),                             # (F, U)
    )
    return {"rows": rows, "lanes": lanes,
            "dims": (backcast_length, forecast_length, units)}


# ----------------------------------------------------------------------------- reference

def reference_forward(x, raw_params, backcast_length, forecast_length):
    """Plain-JAX f32 reference mirroring the PyTorch TrendBlock.forward."""
    if x.ndim == 3 and x.shape[-1] == 1:
        x = x[..., 0]
    (w1, b1, w2, b2, w3, b3, w4, b4, wt) = raw_params
    h = jax.nn.relu(x @ w1 + b1)
    h = jax.nn.relu(h @ w2 + b2)
    h = jax.nn.relu(h @ w3 + b3)
    h = jax.nn.relu(h @ w4 + b4)
    theta = h @ wt
    t_back, t_fore = trend_bases(wt.shape[1], backcast_length, forecast_length)
    return theta @ t_back, theta @ t_fore


# ----------------------------------------------------------------------------- main

if __name__ == "__main__":
    units = 32
    thetas_dim = 3
    backcast_length = 16
    forecast_length = 8

    key = jax.random.PRNGKey(0)
    k_x1, k_x2, k_p = jax.random.split(key, 3)

    raw_params = init_trend_block_params(
        k_p, units, thetas_dim, backcast_length, forecast_length
    )
    packed = pack_params(raw_params, backcast_length, forecast_length,
                         matmul_dtype=jnp.bfloat16)

    # (1) Small batch (B=16), shaped (B, L, 1) to exercise squeeze_last_dim.
    #     Uses the row-major single-grid-step kernel.
    x_small = jax.random.normal(k_x1, (16, backcast_length, 1), dtype=jnp.float32)
    back_s, fore_s = trend_block_forward(x_small, packed)
    jax.block_until_ready((back_s, fore_s))
    ref_bs, ref_fs = reference_forward(x_small, raw_params, backcast_length, forecast_length)
    assert back_s.shape == (16, backcast_length)
    assert fore_s.shape == (16, forecast_length)
    assert jnp.allclose(back_s, ref_bs, atol=3e-2, rtol=3e-2)
    assert jnp.allclose(fore_s, ref_fs, atol=3e-2, rtol=3e-2)

    # (2) Larger, non-tile-divisible batch (B=200): batch-on-lanes kernel,
    #     two parallel grid steps (v7x megacore), zero-padded tail sliced off.
    x_big = jax.random.normal(k_x2, (200, backcast_length), dtype=jnp.float32)
    back_b, fore_b = trend_block_forward(x_big, packed)
    jax.block_until_ready((back_b, fore_b))
    ref_bb, ref_fb = reference_forward(x_big, raw_params, backcast_length, forecast_length)
    assert back_b.shape == (200, backcast_length)
    assert fore_b.shape == (200, forecast_length)
    # bf16 matmul operands with f32 accumulation -> relaxed tolerance vs. f32 reference.
    assert jnp.allclose(back_b, ref_bb, atol=3e-2, rtol=3e-2)
    assert jnp.allclose(fore_b, ref_fb, atol=3e-2, rtol=3e-2)

    print("KERNEL_OK")
</pallas_src>

<mosaic_0001>
module attributes {stable_mosaic.version = 11 : i64} {
  func.func @trend_block_kernel_rows(%arg0: i32, %arg1: memref<16x16xbf16, #tpu.memory_space<vmem>>, %arg2: memref<16x32xbf16, #tpu.memory_space<vmem>>, %arg3: memref<3x32x32xbf16, #tpu.memory_space<vmem>>, %arg4: memref<4x32xf32, #tpu.memory_space<vmem>>, %arg5: memref<32x24xbf16, #tpu.memory_space<vmem>>, %arg6: memref<16x24xf32, #tpu.memory_space<vmem>>) attributes {dimension_semantics = [#tpu.dimension_semantics<parallel>], iteration_bounds = array<i64: 1>, scalar_prefetch = 0 : i64, scratch_operands = 0 : i64, tpu.core_type = #tpu.core_type<tc>, window_params = [{transform_indices = @transform_0, window_bounds = array<i64: 16, 16>}, {pipeline_mode = #tpu.pipeline_mode<synchronous>, transform_indices = @transform_1, window_bounds = array<i64: 16, 32>}, {pipeline_mode = #tpu.pipeline_mode<synchronous>, transform_indices = @transform_2, window_bounds = array<i64: 3, 32, 32>}, {pipeline_mode = #tpu.pipeline_mode<synchronous>, transform_indices = @transform_3, window_bounds = array<i64: 4, 32>}, {pipeline_mode = #tpu.pipeline_mode<synchronous>, transform_indices = @transform_4, window_bounds = array<i64: 32, 24>}, {transform_indices = @transform_5, window_bounds = array<i64: 16, 24>}]} {
    %c0 = arith.constant 0 : index
    %c0_0 = arith.constant 0 : index
    %0 = vector.load %arg4[%c0, %c0_0] : memref<4x32xf32, #tpu.memory_space<vmem>>, vector<4x32xf32>
    %c0_1 = arith.constant 0 : index
    %c0_2 = arith.constant 0 : index
    %1 = vector.load %arg1[%c0_1, %c0_2] : memref<16x16xbf16, #tpu.memory_space<vmem>>, vector<16x16xbf16>
    %c0_3 = arith.constant 0 : index
    %c0_4 = arith.constant 0 : index
    %2 = vector.load %arg2[%c0_3, %c0_4] : memref<16x32xbf16, #tpu.memory_space<vmem>>, vector<16x32xbf16>
    %cst = arith.constant dense<0.000000e+00> : vector<16x32xf32>
    %3 = tpu.matmul %1, %2, %cst {dimension_numbers = #tpu.dot_dimension_numbers<[1], [0], [0], [1], [0, 0, 1, 1], [], []>} : vector<16x16xbf16>, vector<16x32xbf16>, vector<16x32xf32> -> vector<16x32xf32>
    %4 = vector.extract_strided_slice %0 {offsets = [0, 0], sizes = [1, 32], strides = [1, 1]} : vector<4x32xf32> to vector<1x32xf32>
    %5 = vector.broadcast %4 : vector<1x32xf32> to vector<16x32xf32>
    %6 = arith.addf %3, %5 : vector<16x32xf32>
    %cst_5 = arith.constant 0.000000e+00 : f32
    %7 = vector.broadcast %cst_5 : f32 to vector<16x32xf32>
    %8 = arith.maximumf %6, %7 : vector<16x32xf32>
    %9 = arith.truncf %8 : vector<16x32xf32> to vector<16x32xbf16>
    %c0_6 = arith.constant 0 : index
    %c0_7 = arith.constant 0 : index
    %c0_8 = arith.constant 0 : index
    %10 = vector.load %arg3[%c0_6, %c0_7, %c0_8] : memref<3x32x32xbf16, #tpu.memory_space<vmem>>, vector<1x32x32xbf16>
    %11 = vector.shape_cast %10 : vector<1x32x32xbf16> to vector<32x32xbf16>
    %cst_9 = arith.constant dense<0.000000e+00> : vector<16x32xf32>
    %12 = tpu.matmul %9, %11, %cst_9 {dimension_numbers = #tpu.dot_dimension_numbers<[1], [0], [0], [1], [0, 0, 1, 1], [], []>} : vector<16x32xbf16>, vector<32x32xbf16>, vector<16x32xf32> -> vector<16x32xf32>
    %13 = vector.extract_strided_slice %0 {offsets = [1, 0], sizes = [1, 32], strides = [1, 1]} : vector<4x32xf32> to vector<1x32xf32>
    %14 = vector.broadcast %13 : vector<1x32xf32> to vector<16x32xf32>
    %15 = arith.addf %12, %14 : vector<16x32xf32>
    %cst_10 = arith.constant 0.000000e+00 : f32
    %16 = vector.broadcast %cst_10 : f32 to vector<16x32xf32>
    %17 = arith.maximumf %15, %16 : vector<16x32xf32>
    %18 = arith.truncf %17 : vector<16x32xf32> to vector<16x32xbf16>
    %c1 = arith.constant 1 : index
    %c0_11 = arith.constant 0 : index
    %c0_12 = arith.constant 0 : index
    %19 = vector.load %arg3[%c1, %c0_11, %c0_12] : memref<3x32x32xbf16, #tpu.memory_space<vmem>>, vector<1x32x32xbf16>
    %20 = vector.shape_cast %19 : vector<1x32x32xbf16> to vector<32x32xbf16>
    %cst_13 = arith.constant dense<0.000000e+00> : vector<16x32xf32>
    %21 = tpu.matmul %18, %20, %cst_13 {dimension_numbers = #tpu.dot_dimension_numbers<[1], [0], [0], [1], [0, 0, 1, 1], [], []>} : vector<16x32xbf16>, vector<32x32xbf16>, vector<16x32xf32> -> vector<16x32xf32>
    %22 = vector.extract_strided_slice %0 {offsets = [2, 0], sizes = [1, 32], strides = [1, 1]} : vector<4x32xf32> to vector<1x32xf32>
    %23 = vector.broadcast %22 : vector<1x32xf32> to vector<16x32xf32>
    %24 = arith.addf %21, %23 : vector<16x32xf32>
    %cst_14 = arith.constant 0.000000e+00 : f32
    %25 = vector.broadcast %cst_14 : f32 to vector<16x32xf32>
    %26 = arith.maximumf %24, %25 : vector<16x32xf32>
    %27 = arith.truncf %26 : vector<16x32xf32> to vector<16x32xbf16>
    %c2 = arith.constant 2 : index
    %c0_15 = arith.constant 0 : index
    %c0_16 = arith.constant 0 : index
    %28 = vector.load %arg3[%c2, %c0_15, %c0_16] : memref<3x32x32xbf16, #tpu.memory_space<vmem>>, vector<1x32x32xbf16>
    %29 = vector.shape_cast %28 : vector<1x32x32xbf16> to vector<32x32xbf16>
    %cst_17 = arith.constant dense<0.000000e+00> : vector<16x32xf32>
    %30 = tpu.matmul %27, %29, %cst_17 {dimension_numbers = #tpu.dot_dimension_numbers<[1], [0], [0], [1], [0, 0, 1, 1], [], []>} : vector<16x32xbf16>, vector<32x32xbf16>, vector<16x32xf32> -> vector<16x32xf32>
    %31 = vector.extract_strided_slice %0 {offsets = [3, 0], sizes = [1, 32], strides = [1, 1]} : vector<4x32xf32> to vector<1x32xf32>
    %32 = vector.broadcast %31 : vector<1x32xf32> to vector<16x32xf32>
    %33 = arith.addf %30, %32 : vector<16x32xf32>
    %cst_18 = arith.constant 0.000000e+00 : f32
    %34 = vector.broadcast %cst_18 : f32 to vector<16x32xf32>
    %35 = arith.maximumf %33, %34 : vector<16x32xf32>
    %36 = arith.truncf %35 : vector<16x32xf32> to vector<16x32xbf16>
    %c0_19 = arith.constant 0 : index
    %c0_20 = arith.constant 0 : index
    %37 = vector.load %arg5[%c0_19, %c0_20] : memref<32x24xbf16, #tpu.memory_space<vmem>>, vector<32x24xbf16>
    %cst_21 = arith.constant dense<0.000000e+00> : vector<16x24xf32>
    %38 = tpu.matmul %36, %37, %cst_21 {dimension_numbers = #tpu.dot_dimension_numbers<[1], [0], [0], [1], [0, 0, 1, 1], [], []>} : vector<16x32xbf16>, vector<32x24xbf16>, vector<16x24xf32> -> vector<16x24xf32>
    %c0_22 = arith.constant 0 : index
    %c0_23 = arith.constant 0 : index
    %39 = vector.load %arg6[%c0_22, %c0_23] : memref<16x24xf32, #tpu.memory_space<vmem>>, vector<16x24xf32>
    tpu.vector_store %arg6[%c0_22, %c0_23], %38 {strides = array<i32>} : memref<16x24xf32, #tpu.memory_space<vmem>>, vector<16x24xf32>,
    return
  }
  func.func @transform_0(%arg0: i32) -> (i32, i32) {
    %c0_i32 = arith.constant 0 : i32
    %c0_i32_0 = arith.constant 0 : i32
    return %arg0, %c0_i32 : i32, i32
  }
  func.func @transform_1(%arg0: i32) -> (i32, i32) {
    %c0_i32 = arith.constant 0 : i32
    %c0_i32_0 = arith.constant 0 : i32
    %c0_i32_1 = arith.constant 0 : i32
    return %c0_i32, %c0_i32_0 : i32, i32
  }
  func.func @transform_2(%arg0: i32) -> (i32, i32, i32) {
    %c0_i32 = arith.constant 0 : i32
    %c0_i32_0 = arith.constant 0 : i32
    %c0_i32_1 = arith.constant 0 : i32
    %c0_i32_2 = arith.constant 0 : i32
    return %c0_i32, %c0_i32_0, %c0_i32_1 : i32, i32, i32
  }
  func.func @transform_3(%arg0: i32) -> (i32, i32) {
    %c0_i32 = arith.constant 0 : i32
    %c0_i32_0 = arith.constant 0 : i32
    %c0_i32_1 = arith.constant 0 : i32
    return %c0_i32, %c0_i32_0 : i32, i32
  }
  func.func @transform_4(%arg0: i32) -> (i32, i32) {
    %c0_i32 = arith.constant 0 : i32
    %c0_i32_0 = arith.constant 0 : i32
    %c0_i32_1 = arith.constant 0 : i32
    return %c0_i32, %c0_i32_0 : i32, i32
  }
  func.func @transform_5(%arg0: i32) -> (i32, i32) {
    %c0_i32 = arith.constant 0 : i32
    %c0_i32_0 = arith.constant 0 : i32
    return %arg0, %c0_i32 : i32, i32
  }
}

</mosaic_0001>

<llo_original>
// kernel: tpu_custom_call.1
$region0: #{tpu_custom_call.1}
  #allocation0 [shape = 'u32[]', space=smem, size = 0x4, offset = 0x4, fixed_abs, tag = 'smem constant byte address 0x4 - core index']
  #allocation1 [shape = 'u32[144,128]{1,0:T(1,128)}', space=vmem, size = 0x12000, scoped, tag = 'internal scratch']
  %s0 = inlined_call_operand.vmem [shape: bf16[16,16], index: 0, kind: input, shape index: {}]
  %s1 = inlined_call_operand.vmem [shape: bf16[16,32], index: 1, kind: input, shape index: {}]
  %s2 = inlined_call_operand.hbm [shape: bf16[3,32,32], index: 2, kind: input, shape index: {}]
  %s3 = inlined_call_operand.vmem [shape: f32[4,32], index: 3, kind: input, shape index: {}]
  %s4 = inlined_call_operand.vmem [shape: bf16[32,24], index: 4, kind: input, shape index: {}]
  %s5 = inlined_call_operand.hbm [shape: f32[16,24], index: 5, kind: output, shape index: {}]
  %s6 = sld [smem:[#allocation0]]
  $region34: #{tpu_custom_call.1} parent=0
    _
  %s8 = ssub.s32 1, %s6
  %s9 = scalar_select 0, %s8, %s6
  $region1: #{tpu_custom_call.1} parent=0
    #allocation2 [shape = 'u8[24576]{0}', space=vmem, size = 0x6000, scoped, tag = 'input window, operand 2, single buffered']
    #allocation3 [shape = 's32[1]{0}', space=sflag, size = 0x4, scoped, tag = 'scoped memory for tpu_custom_call.1']
    #allocation4 [shape = 's32[1]{0}', space=sflag, size = 0x4, scoped, tag = 'scoped memory for tpu_custom_call.1']
    #allocation5 [shape = 'u8[8192]{0}', space=vmem, size = 0x2000, scoped, tag = 'output window, operand 0, single buffered']
    %10 = vsyncpa [#allocation3], 0
    %11 = vsyncpa [#allocation4], 0
    // Predicated region
    $region2: #{tpu_custom_call.1} parent=1 // pred_check
      _
    $region3: #{tpu_custom_call.1} parent=1 // pred_check_branch
      %13 = sbr.rel (0) target = $region5
    $region4: #{tpu_custom_call.1} parent=1 // pred_region
      _
    $region5: #{tpu_custom_call.1} parent=1 // pred_fallthru
      _
    // Predicated region
    $region6: #{tpu_custom_call.1} parent=1 // pred_check
      _
    $region7: #{tpu_custom_call.1} parent=1 // pred_check_branch
      %15 = sbr.rel (0) target = $region9
    $region8: #{tpu_custom_call.1} parent=1 // pred_region
      _
    $region9: #{tpu_custom_call.1} parent=1 // pred_fallthru
      _
    // Predicated region
    $region10: #{tpu_custom_call.1} parent=1 // pred_check
      _
    $region11: #{tpu_custom_call.1} parent=1 // pred_check_branch
      %17 = sbr.rel (0) target = $region13
    $region12: #{tpu_custom_call.1} parent=1 // pred_region
      %s19 = ssub.s32 768, 768
      %20 = vsyncadd [#allocation3], %s19
      %s21 = sshll.u32 [#allocation2], 4
      %s22 = int_to_ptr.vmem [resolvable:$true] %s21
      %27 = dma.hbm_to_vmem [thread:$0]  %s2, 768, %s22, [#allocation3], 64, 64, 4
    $region13: #{tpu_custom_call.1} parent=1 // pred_fallthru
      _
    // Predicated region
    $region14: #{tpu_custom_call.1} parent=1 // pred_check
      _
    $region15: #{tpu_custom_call.1} parent=1 // pred_check_branch
      %29 = sbr.rel (0) target = $region17
    $region16: #{tpu_custom_call.1} parent=1 // pred_region
      _
    $region17: #{tpu_custom_call.1} parent=1 // pred_fallthru
      _
    // Predicated region
    $region18: #{tpu_custom_call.1} parent=1 // pred_check
      _
    $region19: #{tpu_custom_call.1} parent=1 // pred_check_branch
      %31 = sbr.rel (0) target = $region21
    $region20: #{tpu_custom_call.1} parent=1 // pred_region
      _
    $region21: #{tpu_custom_call.1} parent=1 // pred_fallthru
      _
    // Predicated region
    $region22: #{tpu_custom_call.1} parent=1 // pred_check
      _
    $region23: #{tpu_custom_call.1} parent=1 // pred_check_branch
      %33 = sbr.rel (0) target = $region25
    $region24: #{tpu_custom_call.1} parent=1 // pred_region
      %34 = dma.done [#allocation3], 768
    $region25: #{tpu_custom_call.1} parent=1 // pred_fallthru
      _
    %v36 = vld [vmem:[%s3] sm:$0xf]
    %v37 = vld [vmem:[%s0] sm:$0xf]
    %v38 = vld [vmem:[%s0 + $0x4] sm:$0xf]
    %v39 = vld [vmem:[%s1] sm:$0xf]
    %v40 = vld [vmem:[%s1 + $0x4] sm:$0xf]
    %v41 = vlaneseq
    %v42 = vshrl.u32 %v41, 7
    %v43 = vsub.s32 0, %v42
    %v44 = vrot.slane %v36, %v43
    %v47 = vunpack.c.l.b16 %v37
    %v48 = vunpack.c.l.b16 %v38
    %v49 = vpack.c.b16 %v48, %v47
    %v52 = vunpack.c.l.b16 %v39
    %v53 = vunpack.c.l.b16 %v40
    %v54 = vpack.c.b16 %v53, %v52
    %vm56 = vcmask 130048
    %v58 = vsel %vm56, %v49, 0
    %60 = vmatprep.subr.bf16.mxu0 0
    %61 = vmatpush1.bf16.msra.mxu0 %v54
    %62 = vmatprep.subr.bf16.mxu0 0
    %63 = vmatpush1.bf16.msra.mxu0 0
    %64 = vmatprep.subr.bf16.mxu0 0
    %65 = vmatpush1.bf16.msra.mxu0 0
    %66 = vmatprep.subr.bf16.mxu0 0
    %67 = vmatpush1.bf16.msra.mxu0 0
    %68 = vmatprep.subr.bf16.mxu0 0
    %69 = vmatpush1.bf16.msra.mxu0 0
    %70 = vmatprep.subr.bf16.mxu0 0
    %71 = vmatpush1.bf16.msra.mxu0 0
    %72 = vmatprep.subr.bf16.mxu0 0
    %73 = vmatpush1.bf16.msra.mxu0 0
    %74 = vmatprep.subr.bf16.mxu0 0
    %75 = vmatpush1.bf16.msra.mxu0 0
    %76 = vmatprep.subr.bf16.mxu0 0
    %77 = vmatpush1.bf16.msra.mxu0 0
    %78 = vmatprep.subr.bf16.mxu0 0
    %79 = vmatpush1.bf16.msra.mxu0 0
    %80 = vmatprep.subr.bf16.mxu0 0
    %81 = vmatpush1.bf16.msra.mxu0 0
    %82 = vmatprep.subr.bf16.mxu0 0
    %83 = vmatpush1.bf16.msra.mxu0 0
    %84 = vmatprep.subr.bf16.mxu0 0
    %85 = vmatpush1.bf16.msra.mxu0 0
    %86 = vmatprep.subr.bf16.mxu0 0
    %87 = vmatpush1.bf16.msra.mxu0 0
    %88 = vmatprep.subr.bf16.mxu0 0
    %89 = vmatpush1.bf16.msra.mxu0 0
    %90 = vmatprep.subr.bf16.mxu0 0
    %91 = vmatpush1.bf16.msra.mxu0 0
    %92 = vmatprep.mubr.bf16.mxu0 0
    %93 = vmatmul.mubr.bf16.gmra.mrb[0].mxu0 %v58
    %v94 = vpop.f32.mrb[0].mxu0
    %v95 = vadd.f32 %v44, %v94
    %v96 = vpop.f32.mrb[0].mxu0
    %v97 = vpop.f32.mrb[0].mxu0
    %v98 = vadd.f32 %v44, %v97
    %v99 = vpop.f32.mrb[0].mxu0
    %100 = vdwg.mxu0
    %v101 = vmax.f32 %v95, 0.0
    %v102 = vmax.f32 %v98, 0.0
    %v103 = vpack.c.bf16 %v102, %v101
    %v104 = vld [vmem:[#allocation2] sm:$0xf]
    %v105 = vld [vmem:[#allocation2 + $0x4] sm:$0xf]
    %v106 = vld [vmem:[#allocation2 + $0x8] sm:$0xf]
    %v107 = vld [vmem:[#allocation2 + $0xc] sm:$0xf]
    %v108 = vlaneseq
    %v109 = vshrl.u32 %v108, 7
    %v110 = vsub.s32 1, %v109
    %v111 = vrot.slane %v36, %v110
    %v116 = vunpack.c.l.b16 %v104
    %v117 = vunpack.c.l.b16 %v105
    %v118 = vunpack.c.l.b16 %v106
    %v119 = vunpack.c.l.b16 %v107
    %v120 = vpack.c.b16 %v117, %v116
    %v121 = vpack.c.b16 %v119, %v118
    %vm124 = vcmask 261120
    %v126 = vsel %vm124, %v103, 0
    %128 = vmatprep.subr.bf16.mxu0 0
    %129 = vmatpush1.bf16.msra.mxu0 %v120
    %130 = vmatprep.subr.bf16.mxu0 0
    %131 = vmatpush1.bf16.msra.mxu0 %v121
    %132 = vmatprep.subr.bf16.mxu0 0
    %133 = vmatpush1.bf16.msra.mxu0 0
    %134 = vmatprep.subr.bf16.mxu0 0
    %135 = vmatpush1.bf16.msra.mxu0 0
    %136 = vmatprep.subr.bf16.mxu0 0
    %137 = vmatpush1.bf16.msra.mxu0 0
    %138 = vmatprep.subr.bf16.mxu0 0
    %139 = vmatpush1.bf16.msra.mxu0 0
    %140 = vmatprep.subr.bf16.mxu0 0
    %141 = vmatpush1.bf16.msra.mxu0 0
    %142 = vmatprep.subr.bf16.mxu0 0
    %143 = vmatpush1.bf16.msra.mxu0 0
    %144 = vmatprep.subr.bf16.mxu0 0
    %145 = vmatpush1.bf16.msra.mxu0 0
    %146 = vmatprep.subr.bf16.mxu0 0
    %147 = vmatpush1.bf16.msra.mxu0 0
    %148 = vmatprep.subr.bf16.mxu0 0
    %149 = vmatpush1.bf16.msra.mxu0 0
    %150 = vmatprep.subr.bf16.mxu0 0
    %151 = vmatpush1.bf16.msra.mxu0 0
    %152 = vmatprep.subr.bf16.mxu0 0
    %153 = vmatpush1.bf16.msra.mxu0 0
    %154 = vmatprep.subr.bf16.mxu0 0
    %155 = vmatpush1.bf16.msra.mxu0 0
    %156 = vmatprep.subr.bf16.mxu0 0
    %157 = vmatpush1.bf16.msra.mxu0 0
    %158 = vmatprep.subr.bf16.mxu0 0
    %159 = vmatpush1.bf16.msra.mxu0 0
    %160 = vmatprep.mubr.bf16.mxu0 0
    %161 = vmatmul.mubr.bf16.gmra.mrb[0].mxu0 %v126
    %v162 = vpop.f32.mrb[0].mxu0
    %v163 = vadd.f32 %v111, %v162
    %v164 = vpop.f32.mrb[0].mxu0
    %v165 = vpop.f32.mrb[0].mxu0
    %v166 = vadd.f32 %v111, %v165
    %v167 = vpop.f32.mrb[0].mxu0
    %168 = vdwg.mxu0
    %v169 = vmax.f32 %v163, 0.0
    %v170 = vmax.f32 %v166, 0.0
    %v171 = vpack.c.bf16 %v170, %v169
    %s172 = scalar_lea.vmem [#allocation2], 16
    %v173 = vld [vmem:[%s172] sm:$0xf]
    %v174 = vld [vmem:[%s172 + $0x4] sm:$0xf]
    %v175 = vld [vmem:[%s172 + $0x8] sm:$0xf]
    %v176 = vld [vmem:[%s172 + $0xc] sm:$0xf]
    %v177 = vlaneseq
    %v178 = vshrl.u32 %v177, 7
    %v179 = vsub.s32 2, %v178
    %v180 = vrot.slane %v36, %v179
    %v185 = vunpack.c.l.b16 %v173
    %v186 = vunpack.c.l.b16 %v174
    %v187 = vunpack.c.l.b16 %v175
    %v188 = vunpack.c.l.b16 %v176
    %v189 = vpack.c.b16 %v186, %v185
    %v190 = vpack.c.b16 %v188, %v187
    %v194 = vsel %vm124, %v171, 0
    %196 = vmatprep.subr.bf16.mxu0 0
    %197 = vmatpush1.bf16.msra.mxu0 %v189
    %198 = vmatprep.subr.bf16.mxu0 0
    %199 = vmatpush1.bf16.msra.mxu0 %v190
    %200 = vmatprep.subr.bf16.mxu0 0
    %201 = vmatpush1.bf16.msra.mxu0 0
    %202 = vmatprep.subr.bf16.mxu0 0
    %203 = vmatpush1.bf16.msra.mxu0 0
    %204 = vmatprep.subr.bf16.mxu0 0
    %205 = vmatpush1.bf16.msra.mxu0 0
    %206 = vmatprep.subr.bf16.mxu0 0
    %207 = vmatpush1.bf16.msra.mxu0 0
    %208 = vmatprep.subr.bf16.mxu0 0
    %209 = vmatpush1.bf16.msra.mxu0 0
    %210 = vmatprep.subr.bf16.mxu0 0
    %211 = vmatpush1.bf16.msra.mxu0 0
    %212 = vmatprep.subr.bf16.mxu0 0
    %213 = vmatpush1.bf16.msra.mxu0 0
    %214 = vmatprep.subr.bf16.mxu0 0
    %215 = vmatpush1.bf16.msra.mxu0 0
    %216 = vmatprep.subr.bf16.mxu0 0
    %217 = vmatpush1.bf16.msra.mxu0 0
    %218 = vmatprep.subr.bf16.mxu0 0
    %219 = vmatpush1.bf16.msra.mxu0 0
    %220 = vmatprep.subr.bf16.mxu0 0
    %221 = vmatpush1.bf16.msra.mxu0 0
    %222 = vmatprep.subr.bf16.mxu0 0
    %223 = vmatpush1.bf16.msra.mxu0 0
    %224 = vmatprep.subr.bf16.mxu0 0
    %225 = vmatpush1.bf16.msra.mxu0 0
    %226 = vmatprep.subr.bf16.mxu0 0
    %227 = vmatpush1.bf16.msra.mxu0 0
    %228 = vmatprep.mubr.bf16.mxu0 0
    %229 = vmatmul.mubr.bf16.gmra.mrb[0].mxu0 %v194
    %v230 = vpop.f32.mrb[0].mxu0
    %v231 = vadd.f32 %v180, %v230
    %v232 = vpop.f32.mrb[0].mxu0
    %v233 = vpop.f32.mrb[0].mxu0
    %v234 = vadd.f32 %v180, %v233
    %v235 = vpop.f32.mrb[0].mxu0
    %236 = vdwg.mxu0
    %v237 = vmax.f32 %v231, 0.0
    %v238 = vmax.f32 %v234, 0.0
    %v239 = vpack.c.bf16 %v238, %v237
    %s240 = scalar_lea.vmem [#allocation2], 32
    %v241 = vld [vmem:[%s240] sm:$0xf]
    %v242 = vld [vmem:[%s240 + $0x4] sm:$0xf]
    %v243 = vld [vmem:[%s240 + $0x8] sm:$0xf]
    %v244 = vld [vmem:[%s240 + $0xc] sm:$0xf]
    %v245 = vlaneseq
    %v246 = vshrl.u32 %v245, 7
    %v247 = vsub.s32 3, %v246
    %v248 = vrot.slane %v36, %v247
    %v253 = vunpack.c.l.b16 %v241
    %v254 = vunpack.c.l.b16 %v242
    %v255 = vunpack.c.l.b16 %v243
    %v256 = vunpack.c.l.b16 %v244
    %v257 = vpack.c.b16 %v254, %v253
    %v258 = vpack.c.b16 %v256, %v255
    %v262 = vsel %vm124, %v239, 0
    %264 = vmatprep.subr.bf16.mxu0 0
    %265 = vmatpush1.bf16.msra.mxu0 %v257
    %266 = vmatprep.subr.bf16.mxu0 0
    %267 = vmatpush1.bf16.msra.mxu0 %v258
    %268 = vmatprep.subr.bf16.mxu0 0
    %269 = vmatpush1.bf16.msra.mxu0 0
    %270 = vmatprep.subr.bf16.mxu0 0
    %271 = vmatpush1.bf16.msra.mxu0 0
    %272 = vmatprep.subr.bf16.mxu0 0
    %273 = vmatpush1.bf16.msra.mxu0 0
    %274 = vmatprep.subr.bf16.mxu0 0
    %275 = vmatpush1.bf16.msra.mxu0 0
    %276 = vmatprep.subr.bf16.mxu0 0
    %277 = vmatpush1.bf16.msra.mxu0 0
    %278 = vmatprep.subr.bf16.mxu0 0
    %279 = vmatpush1.bf16.msra.mxu0 0
    %280 = vmatprep.subr.bf16.mxu0 0
    %281 = vmatpush1.bf16.msra.mxu0 0
    %282 = vmatprep.subr.bf16.mxu0 0
    %283 = vmatpush1.bf16.msra.mxu0 0
    %284 = vmatprep.subr.bf16.mxu0 0
    %285 = vmatpush1.bf16.msra.mxu0 0
    %286 = vmatprep.subr.bf16.mxu0 0
    %287 = vmatpush1.bf16.msra.mxu0 0
    %288 = vmatprep.subr.bf16.mxu0 0
    %289 = vmatpush1.bf16.msra.mxu0 0
    %290 = vmatprep.subr.bf16.mxu0 0
    %291 = vmatpush1.bf16.msra.mxu0 0
    %292 = vmatprep.subr.bf16.mxu0 0
    %293 = vmatpush1.bf16.msra.mxu0 0
    %294 = vmatprep.subr.bf16.mxu0 0
    %295 = vmatpush1.bf16.msra.mxu0 0
    %296 = vmatprep.mubr.bf16.mxu0 0
    %297 = vmatmul.mubr.bf16.gmra.mrb[0].mxu0 %v262
    %v298 = vpop.f32.mrb[0].mxu0
    %v299 = vadd.f32 %v248, %v298
    %v300 = vpop.f32.mrb[0].mxu0
    %v301 = vpop.f32.mrb[0].mxu0
    %v302 = vadd.f32 %v248, %v301
    %v303 = vpop.f32.mrb[0].mxu0
    %304 = vdwg.mxu0
    %v305 = vmax.f32 %v299, 0.0
    %v306 = vmax.f32 %v302, 0.0
    %v307 = vpack.c.bf16 %v306, %v305
    %v308 = vld [vmem:[%s4] sm:$0xf]
    %v309 = vld [vmem:[%s4 + $0x4] sm:$0xf]
    %v310 = vld [vmem:[%s4 + $0x8] sm:$0xf]
    %v311 = vld [vmem:[%s4 + $0xc] sm:$0xf]
    %v316 = vunpack.c.l.b16 %v308
    %v317 = vunpack.c.l.b16 %v309
    %v318 = vunpack.c.l.b16 %v310
    %v319 = vunpack.c.l.b16 %v311
    %v320 = vpack.c.b16 %v317, %v316
    %v321 = vpack.c.b16 %v319, %v318
    %v325 = vsel %vm124, %v307, 0
    %327 = vmatprep.subr.bf16.mxu0 0
    %328 = vmatpush1.bf16.msra.mxu0 %v320
    %329 = vmatprep.subr.bf16.mxu0 0
    %330 = vmatpush1.bf16.msra.mxu0 %v321
    %331 = vmatprep.subr.bf16.mxu0 0
    %332 = vmatpush1.bf16.msra.mxu0 0
    %333 = vmatprep.subr.bf16.mxu0 0
    %334 = vmatpush1.bf16.msra.mxu0 0
    %335 = vmatprep.subr.bf16.mxu0 0
    %336 = vmatpush1.bf16.msra.mxu0 0
    %337 = vmatprep.subr.bf16.mxu0 0
    %338 = vmatpush1.bf16.msra.mxu0 0
    %339 = vmatprep.subr.bf16.mxu0 0
    %340 = vmatpush1.bf16.msra.mxu0 0
    %341 = vmatprep.subr.bf16.mxu0 0
    %342 = vmatpush1.bf16.msra.mxu0 0
    %343 = vmatprep.subr.bf16.mxu0 0
    %344 = vmatpush1.bf16.msra.mxu0 0
    %345 = vmatprep.subr.bf16.mxu0 0
    %346 = vmatpush1.bf16.msra.mxu0 0
    %347 = vmatprep.subr.bf16.mxu0 0
    %348 = vmatpush1.bf16.msra.mxu0 0
    %349 = vmatprep.subr.bf16.mxu0 0
    %350 = vmatpush1.bf16.msra.mxu0 0
    %351 = vmatprep.subr.bf16.mxu0 0
    %352 = vmatpush1.bf16.msra.mxu0 0
    %353 = vmatprep.subr.bf16.mxu0 0
    %354 = vmatpush1.bf16.msra.mxu0 0
    %355 = vmatprep.subr.bf16.mxu0 0
    %356 = vmatpush1.bf16.msra.mxu0 0
    %357 = vmatprep.subr.bf16.mxu0 0
    %358 = vmatpush1.bf16.msra.mxu0 0
    %359 = vmatprep.mubr.bf16.mxu0 0
    %360 = vmatmul.mubr.bf16.gmra.mrb[0].mxu0 %v325
    %v361 = vpop.f32.mrb[0].mxu0
    %v362 = vadd.f32 0.0, %v361
    %v363 = vpop.f32.mrb[0].mxu0
    %v364 = vpop.f32.mrb[0].mxu0
    %v365 = vadd.f32 0.0, %v364
    %v366 = vpop.f32.mrb[0].mxu0
    %367 = vdwg.mxu0
    %vm368 = vcmask 195584
    %369 = vst.msk [vmem:[#allocation5] sm:$0xff] %vm368, %v362
    %370 = vst.msk [vmem:[#allocation5 + $0x8] sm:$0xff] %vm368, %v365
    // Predicated region
    $region26: #{tpu_custom_call.1} parent=1 // pred_check
      _
    $region27: #{tpu_custom_call.1} parent=1 // pred_check_branch
      %372 = sbr.rel (0) target = $region29
    $region28: #{tpu_custom_call.1} parent=1 // pred_region
      %s374 = ssub.s32 256, 256
      %375 = vsyncadd [#allocation4], %s374
      %s376 = sshll.u32 [#allocation5], 4
      %s377 = int_to_ptr.vmem [resolvable:$true] %s376
      %382 = dma.vmem_to_hbm [thread:$0]  %s377, 256, %s5, [#allocation4], 128, 128, 8
    $region29: #{tpu_custom_call.1} parent=1 // pred_fallthru
      _
    // Predicated region
    $region30: #{tpu_custom_call.1} parent=1 // pred_check
      _
    $region31: #{tpu_custom_call.1} parent=1 // pred_check_branch
      %384 = sbr.rel (0) target = $region33
    $region32: #{tpu_custom_call.1} parent=1 // pred_region
      %385 = dma.done [#allocation4], 256
    $region33: #{tpu_custom_call.1} parent=1 // pred_fallthru
      _
    %386 = vsyncpa [#allocation3], 1
    %387 = vsyncpa [#allocation4], 1

</llo_original>
